<compile_context>
chip_gen: v7x
topology: tpu7x:2x2x1
jax: 0.10.0
libtpu: 0.0.40
codegen_flags: <defaults>
</compile_context>

<pallas_src>
import math

import jax
import jax.numpy as jnp
from jax.experimental import pallas as pl
from jax.experimental.pallas import tpu as pltpu


def _xi_kernel(x_ref, w_ref, b_ref, o_ref):
    # One MXU pass per grid step: lane-dense (tm, P*K) @ (P*K, P*N) + bias,
    # tanh on the EUP, full-width unmasked store.
    acc = jnp.dot(x_ref[...], w_ref[...], preferred_element_type=jnp.float32)
    acc = acc + b_ref[...]
    o_ref[...] = jnp.tanh(acc).astype(o_ref.dtype)


def _pack_factor(n_out):
    """How many batch rows to pack so the packed output width is lane-dense."""
    return math.lcm(n_out, 128) // n_out


def prepare_xi_params(weight, bias, s):
    """One-time parameter prep (do NOT call per forward step).

    weight: (s*s, 2*ln)  -- PyTorch nn.Linear layout (out_features, in_features)
    bias:   (s*s,)
    Returns a block-diagonal packed weight (P*K, P*N) and packed bias (1, P*N).
    """
    n_out, k_in = weight.shape
    assert n_out == s * s
    pack = _pack_factor(n_out)
    w_t = weight.T                                   # (K, N), one-time
    eye = jnp.eye(pack, dtype=weight.dtype)          # (P, P)
    # block (p, q) of the packed weight is eye[p, q] * w_t  -> block diagonal
    w_block = jnp.einsum("pq,kn->pkqn", eye, w_t).reshape(pack * k_in,
                                                          pack * n_out)
    b_block = jnp.tile(bias, pack).reshape(1, pack * n_out)
    return w_block, b_block, pack


def xi_forward(x, w_block, b_block, s, pack, block_rows=512):
    """x: (M, 2*ln) f32. Returns (M, s, s) = tanh(x @ W.T + b).view(M, s, s)."""
    m, k_in = x.shape
    n_out = s * s
    pk = pack * k_in
    pn = pack * n_out

    # ---- choose the packed-row tile and pad M so the grid divides evenly ----
    m_packed = -(-m // pack)                              # cdiv(M, pack)
    tm = min(block_rows, max(8, ((m_packed + 7) // 8) * 8))
    m_pad = ((m_packed + tm - 1) // tm) * tm              # packed rows, padded
    rows_needed = m_pad * pack
    if rows_needed != m:
        x = jnp.pad(x, ((0, rows_needed - m), (0, 0)))
    # Free row-major regroup: pack `pack` logical rows into one lane-dense row.
    x_packed = x.reshape(m_pad, pk)

    out_packed = pl.pallas_call(
        _xi_kernel,
        out_shape=jax.ShapeDtypeStruct((m_pad, pn), x.dtype),
        grid_spec=pltpu.PrefetchScalarGridSpec(
            num_scalar_prefetch=0,
            grid=(m_pad // tm,),
            in_specs=[
                # activations stream over the M grid
                pl.BlockSpec((tm, pk), lambda i: (i, 0)),
                # packed weight / bias: constant block index -> VMEM-resident
                pl.BlockSpec((pk, pn), lambda i: (0, 0)),
                pl.BlockSpec((1, pn), lambda i: (0, 0)),
            ],
            out_specs=pl.BlockSpec((tm, pn), lambda i: (i, 0)),
        ),
        compiler_params=pltpu.CompilerParams(
            # M tiles are independent -> shard across v7x's 2 TensorCores.
            dimension_semantics=("parallel",),
        ),
    )(x_packed, w_block, b_block)

    # Packed (m_pad, P*N) row-major is bit-identical layout to (rows, N):
    # un-pack is a free view; drop padded rows; final view to (M, s, s).
    out = out_packed.reshape(rows_needed, n_out)[:m]
    return out.reshape(m, s, s)


if __name__ == "__main__":
    # Module hyperparameters (consistent with the PyTorch forward)
    ln = 16             # node feature dim -> input features = 2*ln = 32
    s = 4               # output state s**2 = 16, viewed as (bs, s, s)
    bs = 8192           # batch of edges (large enough to amortize launch cost)

    key = jax.random.PRNGKey(0)
    kx, kw, kb = jax.random.split(key, 3)

    # PyTorch nn.Linear parameter shapes: weight (out, in), bias (out,)
    x = jax.random.normal(kx, (bs, 2 * ln), dtype=jnp.float32)
    weight = jax.random.normal(kw, (s * s, 2 * ln), dtype=jnp.float32) * 0.1
    bias = jax.random.normal(kb, (s * s,), dtype=jnp.float32) * 0.1

    # One-time parameter packing (block-diagonal lane-dense weight).
    w_block, b_block, pack = prepare_xi_params(weight, bias, s)

    # --- main run: multi-step grid, weight resident across steps ---
    out = xi_forward(x, w_block, b_block, s, pack)
    out = jax.block_until_ready(out)

    ref = jnp.tanh(x @ weight.T + bias).reshape(bs, s, s)
    assert out.shape == (bs, s, s)
    assert jnp.allclose(out, ref, atol=1e-5, rtol=1e-5)

    # --- ragged-batch run: bs not a multiple of the pack factor ---
    bs2 = 10
    x2 = x[:bs2]
    out2 = jax.block_until_ready(xi_forward(x2, w_block, b_block, s, pack))
    ref2 = jnp.tanh(x2 @ weight.T + bias).reshape(bs2, s, s)
    assert out2.shape == (bs2, s, s)
    assert jnp.allclose(out2, ref2, atol=1e-5, rtol=1e-5)

    print("KERNEL_OK")
</pallas_src>

<mosaic_0001>
module attributes {stable_mosaic.version = 11 : i64} {
  func.func @_xi_kernel(%arg0: i32, %arg1: memref<512x256xf32, #tpu.memory_space<vmem>>, %arg2: memref<256x128xf32, #tpu.memory_space<vmem>>, %arg3: memref<1x128xf32, #tpu.memory_space<vmem>>, %arg4: memref<512x128xf32, #tpu.memory_space<vmem>>) attributes {dimension_semantics = [#tpu.dimension_semantics<parallel>], iteration_bounds = array<i64: 2>, scalar_prefetch = 0 : i64, scratch_operands = 0 : i64, tpu.core_type = #tpu.core_type<tc>, window_params = [{transform_indices = @transform_0, window_bounds = array<i64: 512, 256>}, {pipeline_mode = #tpu.pipeline_mode<synchronous>, transform_indices = @transform_1, window_bounds = array<i64: 256, 128>}, {pipeline_mode = #tpu.pipeline_mode<synchronous>, transform_indices = @transform_2, window_bounds = array<i64: 1, 128>}, {transform_indices = @transform_3, window_bounds = array<i64: 512, 128>}]} {
    %c0 = arith.constant 0 : index
    %c0_0 = arith.constant 0 : index
    %0 = vector.load %arg1[%c0, %c0_0] : memref<512x256xf32, #tpu.memory_space<vmem>>, vector<512x256xf32>
    %c0_1 = arith.constant 0 : index
    %c0_2 = arith.constant 0 : index
    %1 = vector.load %arg2[%c0_1, %c0_2] : memref<256x128xf32, #tpu.memory_space<vmem>>, vector<256x128xf32>
    %cst = arith.constant dense<0.000000e+00> : vector<512x128xf32>
    %2 = tpu.matmul %0, %1, %cst {dimension_numbers = #tpu.dot_dimension_numbers<[1], [0], [0], [1], [0, 0, 1, 1], [], []>} : vector<512x256xf32>, vector<256x128xf32>, vector<512x128xf32> -> vector<512x128xf32>
    %c0_3 = arith.constant 0 : index
    %c0_4 = arith.constant 0 : index
    %3 = vector.load %arg3[%c0_3, %c0_4] : memref<1x128xf32, #tpu.memory_space<vmem>>, vector<1x128xf32>
    %4 = vector.broadcast %3 : vector<1x128xf32> to vector<512x128xf32>
    %5 = arith.addf %2, %4 : vector<512x128xf32>
    %6 = math.tanh %5 : vector<512x128xf32>
    %c0_5 = arith.constant 0 : index
    %c0_6 = arith.constant 0 : index
    %7 = vector.load %arg4[%c0_5, %c0_6] : memref<512x128xf32, #tpu.memory_space<vmem>>, vector<512x128xf32>
    tpu.vector_store %arg4[%c0_5, %c0_6], %6 {strides = array<i32>} : memref<512x128xf32, #tpu.memory_space<vmem>>, vector<512x128xf32>,
    return
  }
  func.func @transform_0(%arg0: i32) -> (i32, i32) {
    %c0_i32 = arith.constant 0 : i32
    %c0_i32_0 = arith.constant 0 : i32
    return %arg0, %c0_i32 : i32, i32
  }
  func.func @transform_1(%arg0: i32) -> (i32, i32) {
    %c0_i32 = arith.constant 0 : i32
    %c0_i32_0 = arith.constant 0 : i32
    %c0_i32_1 = arith.constant 0 : i32
    return %c0_i32, %c0_i32_0 : i32, i32
  }
  func.func @transform_2(%arg0: i32) -> (i32, i32) {
    %c0_i32 = arith.constant 0 : i32
    %c0_i32_0 = arith.constant 0 : i32
    %c0_i32_1 = arith.constant 0 : i32
    return %c0_i32, %c0_i32_0 : i32, i32
  }
  func.func @transform_3(%arg0: i32) -> (i32, i32) {
    %c0_i32 = arith.constant 0 : i32
    %c0_i32_0 = arith.constant 0 : i32
    return %arg0, %c0_i32 : i32, i32
  }
}

</mosaic_0001>

<llo_original>
// kernel: tpu_custom_call.1
$region0: #{tpu_custom_call.1}
  #allocation0 [shape = 'u32[]', space=smem, size = 0x4, offset = 0x4, fixed_abs, tag = 'smem constant byte address 0x4 - core index']
  #allocation1 [shape = 'u32[144,128]{1,0:T(1,128)}', space=vmem, size = 0x12000, scoped, tag = 'internal scratch']
  %s0 = inlined_call_operand.hbm [shape: f32[1024,256], index: 0, kind: input, shape index: {}]
  %s1 = inlined_call_operand.hbm [shape: f32[256,128], index: 1, kind: input, shape index: {}]
  %s2 = inlined_call_operand.vmem [shape: f32[1,128], index: 2, kind: input, shape index: {}]
  %s3 = inlined_call_operand.hbm [shape: f32[1024,128], index: 3, kind: output, shape index: {}]
  %s4 = sld [smem:[#allocation0]]
  $region53: #{tpu_custom_call.1} parent=0
    _
  %s6 = ssub.s32 1, %s4
  %s7 = scalar_select 0, %s6, %s4
  $region1: #{tpu_custom_call.1} parent=0
    #allocation2 [shape = 'u8[1048576]{0}', space=vmem, size = 0x100000, scoped, tag = 'input window, operand 0']
    #allocation3 [shape = 's32[2]{0}', space=sflag, size = 0x8, scoped, tag = 'scoped memory for tpu_custom_call.1']
    #allocation4 [shape = 's32[2]{0}', space=sflag, size = 0x8, scoped, tag = 'scoped memory for tpu_custom_call.1']
    #allocation5 [shape = 'u8[131072]{0}', space=vmem, size = 0x20000, scoped, tag = 'input window, operand 1, single buffered']
    #allocation6 [shape = 's32[1]{0}', space=sflag, size = 0x4, scoped, tag = 'scoped memory for tpu_custom_call.1']
    #allocation7 [shape = 'u8[524288]{0}', space=vmem, size = 0x80000, scoped, tag = 'output window, operand 0']
    %8 = vsyncpa [#allocation3], 0
    %s9 = scalar_lea.sflag [#allocation3], 1
    %10 = vsyncpa %s9, 0
    %11 = vsyncpa [#allocation6], 0
    %12 = vsyncpa [#allocation4], 0
    %s13 = scalar_lea.sflag [#allocation4], 1
    %14 = vsyncpa %s13, 0
    loop: start=0, step=1, limit=4
    $region2: #{tpu_custom_call.1} parent=1 // loop_pre_header
      _
    $region3: #{tpu_custom_call.1} parent=1 // loop_header
      %s16 = sphi 0, %s20
      %p17 = scmp.ge.s32.totalorder %s16, 4
      %s26 = sphi 0, %s28
      %s29 = sphi 0, %s26
      %s30 = sphi 0, %s29
      %s46 = sphi 0, %s30
      %s50 = sphi 0, %s50
      %s52 = sphi 0, %s50
      %s53 = sphi 0, %s52
      %s67 = sphi 0, %s53
      %s71 = sphi 0, %s71
      %s73 = sphi 0, %s71
      %s74 = sphi 0, %s73
      %s88 = sphi 0, %s74
      %s94 = sphi 0, %s96
      %s97 = sphi 0, %s94
      %s98 = sphi 0, %s97
      %s114 = sphi 0, %s98
    $region4: #{tpu_custom_call.1} parent=1 // loop_header_branch
      %19 = sbr.rel (%p17) target = $region8
    $region5: #{tpu_custom_call.1} parent=1 // loop_body
      %s21 = ssub.s32 %s16, 1
      %s22 = ssub.s32 %s16, 2
      %s23 = sadd.s32 %s16, 1
      %s24 = ssub.s32 %s16, %s23
      %p25 = scmp.eq.s32.totalorder %s24, 0
      %s27 = sadd.s32 %s26, 1
      %s28 = scalar_select %p25, %s26, %s27
      %p31 = pneg %p25
      %p32 = scmp.eq.s32.totalorder %s16, 1
      %p33 = por %p31, %p32
      %p34 = scmp.ne.s32.totalorder %s26, %s29
      %p35 = scmp.eq.s32.totalorder %s16, 0
      %p36 = por %p34, %p35
      %p37 = scmp.ne.s32.totalorder %s26, %s29
      %p38 = scmp.eq.s32.totalorder %s21, 1
      %p39 = por %p37, %p38
      %p40 = scmp.ne.s32.totalorder %s29, %s30
      %p41 = scmp.eq.s32.totalorder %s21, 0
      %p42 = por %p40, %p41
      %p43 = scmp.ne.s32.totalorder %s29, %s30
      %p44 = scmp.eq.s32.totalorder %s22, 1
      %p45 = por %p43, %p44
      %p47 = scmp.ne.s32.totalorder %s30, %s46
      %p48 = scmp.eq.s32.totalorder %s22, 0
      %p49 = por %p47, %p48
      %s51 = sadd.s32 %s50, 1
      %p54 = scmp.eq.s32.totalorder %s16, 1
      %p55 = scmp.ne.s32.totalorder %s50, %s52
      %p56 = scmp.eq.s32.totalorder %s16, 0
      %p57 = por %p55, %p56
      %p58 = scmp.ne.s32.totalorder %s50, %s52
      %p59 = scmp.eq.s32.totalorder %s21, 1
      %p60 = por %p58, %p59
      %p61 = scmp.ne.s32.totalorder %s52, %s53
      %p62 = scmp.eq.s32.totalorder %s21, 0
      %p63 = por %p61, %p62
      %p64 = scmp.ne.s32.totalorder %s52, %s53
      %p65 = scmp.eq.s32.totalorder %s22, 1
      %p66 = por %p64, %p65
      %p68 = scmp.ne.s32.totalorder %s53, %s67
      %p69 = scmp.eq.s32.totalorder %s22, 0
      %p70 = por %p68, %p69
      %s72 = sadd.s32 %s71, 1
      %p75 = scmp.eq.s32.totalorder %s16, 1
      %p76 = scmp.ne.s32.totalorder %s71, %s73
      %p77 = scmp.eq.s32.totalorder %s16, 0
      %p78 = por %p76, %p77
      %p79 = scmp.ne.s32.totalorder %s71, %s73
      %p80 = scmp.eq.s32.totalorder %s21, 1
      %p81 = por %p79, %p80
      %p82 = scmp.ne.s32.totalorder %s73, %s74
      %p83 = scmp.eq.s32.totalorder %s21, 0
      %p84 = por %p82, %p83
      %p85 = scmp.ne.s32.totalorder %s73, %s74
      %p86 = scmp.eq.s32.totalorder %s22, 1
      %p87 = por %p85, %p86
      %p89 = scmp.ne.s32.totalorder %s74, %s88
      %p90 = scmp.eq.s32.totalorder %s22, 0
      %p91 = por %p89, %p90
      %s92 = ssub.s32 %s16, %s23
      %p93 = scmp.eq.s32.totalorder %s92, 0
      %s95 = sadd.s32 %s94, 1
      %s96 = scalar_select %p93, %s94, %s95
      %p99 = pneg %p93
      %p100 = scmp.eq.s32.totalorder %s16, 1
      %p101 = por %p99, %p100
      %p102 = scmp.ne.s32.totalorder %s94, %s97
      %p103 = scmp.eq.s32.totalorder %s16, 0
      %p104 = por %p102, %p103
      %p105 = scmp.ne.s32.totalorder %s94, %s97
      %p106 = scmp.eq.s32.totalorder %s21, 1
      %p107 = por %p105, %p106
      %p108 = scmp.ne.s32.totalorder %s97, %s98
      %p109 = scmp.eq.s32.totalorder %s21, 0
      %p110 = por %p108, %p109
      %p111 = scmp.ne.s32.totalorder %s97, %s98
      %p112 = scmp.eq.s32.totalorder %s22, 1
      %p113 = por %p111, %p112
      %p115 = scmp.ne.s32.totalorder %s98, %s114
      %p116 = scmp.eq.s32.totalorder %s22, 0
      %p117 = por %p115, %p116
      %p118 = scmp.le.s32.totalorder 1, %s16
      %p119 = scmp.lt.s32.totalorder %s16, 3
      %p120 = pnand %p118, %p119
      %p121 = pneg %p120
      // Predicated region
      $region9: #{tpu_custom_call.1} parent=5 // pred_check
        _
      $region10: #{tpu_custom_call.1} parent=5 // pred_check_branch
        %123 = sbr.rel (%p120) target = $region12
      $region11: #{tpu_custom_call.1} parent=5 // pred_region
        %s124 = ssub.s32 %s16, 1
        // Predicated region
        $region13: #{tpu_custom_call.1} parent=11 // pred_check
          %p125 = pneg %p63
        $region14: #{tpu_custom_call.1} parent=11 // pred_check_branch
          %127 = sbr.rel (%p125) target = $region16
        $region15: #{tpu_custom_call.1} parent=11 // pred_region
          %s129 = ssub.s32 4096, 4096
          %130 = vsyncadd [#allocation6], %s129
          %s131 = sshll.u32 [#allocation5], 4
          %s132 = int_to_ptr.vmem [resolvable:$true] %s131
          %137 = dma.hbm_to_vmem [thread:$0]  %s1, 4096, %s132, [#allocation6], 128, 128, 8
        $region16: #{tpu_custom_call.1} parent=11 // pred_fallthru
          _
        // Predicated region
        $region17: #{tpu_custom_call.1} parent=11 // pred_check
          %p138 = pneg %p84
        $region18: #{tpu_custom_call.1} parent=11 // pred_check_branch
          %140 = sbr.rel (%p138) target = $region20
        $region19: #{tpu_custom_call.1} parent=11 // pred_region
          _
        $region20: #{tpu_custom_call.1} parent=11 // pred_fallthru
          _
      $region12: #{tpu_custom_call.1} parent=5 // pred_fallthru
        _
      %p141 = scmp.lt.s32.totalorder %s16, 2
      // Predicated region
      $region21: #{tpu_custom_call.1} parent=5 // pred_check
        %p142 = pneg %p141
      $region22: #{tpu_custom_call.1} parent=5 // pred_check_branch
        %144 = sbr.rel (%p142) target = $region24
      $region23: #{tpu_custom_call.1} parent=5 // pred_region
        // Predicated region
        $region25: #{tpu_custom_call.1} parent=23 // pred_check
          %p145 = pneg %p36
        $region26: #{tpu_custom_call.1} parent=23 // pred_check_branch
          %147 = sbr.rel (%p145) target = $region28
        $region27: #{tpu_custom_call.1} parent=23 // pred_region
          %s148 = sand.u32 %s26, 1
          %s149 = scalar_lea.sflag [#allocation3], %s148
          %s150 = sand.u32 %s26, 1
          %s151 = smul.addr %s150, 1024
          %s152 = scalar_lea.vmem [#allocation2], %s151
          %s153 = smul.u32 64, %s16
          %s155 = ssub.s32 16384, 16384
          %156 = vsyncadd %s149, %s155
          %s157 = smul.addr %s153, 2
          %s158 = smul.addr %s157, 128
          %s159 = scalar_lea.hbm %s0, %s158
          %s160 = sshll.u32 %s152, 4
          %s161 = int_to_ptr.vmem [resolvable:$true] %s160
          %166 = dma.hbm_to_vmem [thread:$0]  %s159, 16384, %s161, %s149, 256, 256, 16
        $region28: #{tpu_custom_call.1} parent=23 // pred_fallthru
          _
      $region24: #{tpu_custom_call.1} parent=5 // pred_fallthru
        _
      %p167 = scmp.le.s32.totalorder 1, %s16
      %p168 = scmp.lt.s32.totalorder %s16, 3
      %p169 = pnand %p167, %p168
      %p170 = pneg %p169
      // Predicated region
      $region29: #{tpu_custom_call.1} parent=5 // pred_check
        _
      $region30: #{tpu_custom_call.1} parent=5 // pred_check_branch
        %172 = sbr.rel (%p169) target = $region32
      $region31: #{tpu_custom_call.1} parent=5 // pred_region
        %s173 = ssub.s32 %s16, 1
        %s174 = sand.u32 %s29, 1
        %s175 = scalar_lea.sflag [#allocation3], %s174
        %s176 = sand.u32 %s29, 1
        %s177 = smul.addr %s176, 1024
        %s178 = scalar_lea.vmem [#allocation2], %s177
        // Predicated region
        $region33: #{tpu_custom_call.1} parent=31 // pred_check
          %p179 = pneg %p42
        $region34: #{tpu_custom_call.1} parent=31 // pred_check_branch
          %181 = sbr.rel (%p179) target = $region36
        $region35: #{tpu_custom_call.1} parent=31 // pred_region
          %182 = dma.done %s175, 16384
        $region36: #{tpu_custom_call.1} parent=31 // pred_fallthru
          _
        // Predicated region
        $region37: #{tpu_custom_call.1} parent=31 // pred_check
          %p183 = pneg %p63
        $region38: #{tpu_custom_call.1} parent=31 // pred_check_branch
          %185 = sbr.rel (%p183) target = $region40
        $region39: #{tpu_custom_call.1} parent=31 // pred_region
          %186 = dma.done [#allocation6], 4096
        $region40: #{tpu_custom_call.1} parent=31 // pred_fallthru
          _
        %s187 = sand.u32 %s29, 1
        %s188 = scalar_lea.sflag [#allocation3], %s187
        %s189 = sand.u32 %s29, 1
        %s190 = smul.addr %s189, 1024
        %s191 = scalar_lea.vmem [#allocation2], %s190
        %p192 = pneg %p42
        %p193 = pneg %p39
        %p194 = pneg %p63
        %p195 = pneg %p60
        %p196 = pneg %p84
        %p197 = pneg %p81
        %p198 = pneg %p110
        %p199 = pneg %p107
        %s200 = sand.u32 %s97, 1
        %s201 = scalar_lea.sflag [#allocation4], %s200
        %s202 = sand.u32 %s97, 1
        %s203 = smul.addr %s202, 512
        %s204 = scalar_lea.vmem [#allocation7], %s203
        %s205 = smul.u32 64, %s21
        %s206 = smul.u32 64, %s21
        %v207 = vld [vmem:[%s178] sm:$0xff]
        %v208 = vld [vmem:[%s178 + $0x8] sm:$0xff]
        %v209 = vld [vmem:[%s178 + $0x10] sm:$0xff]
        %v210 = vld [vmem:[%s178 + $0x18] sm:$0xff]
        %v211 = vld [vmem:[%s178 + $0x20] sm:$0xff]
        %v212 = vld [vmem:[%s178 + $0x28] sm:$0xff]
        %v213 = vld [vmem:[%s178 + $0x30] sm:$0xff]
        %v214 = vld [vmem:[%s178 + $0x38] sm:$0xff]
        %v215 = vld [vmem:[%s178 + $0x40] sm:$0xff]
        %v216 = vld [vmem:[%s178 + $0x48] sm:$0xff]
        %v217 = vld [vmem:[%s178 + $0x50] sm:$0xff]
        %v218 = vld [vmem:[%s178 + $0x58] sm:$0xff]
        %v219 = vld [vmem:[%s178 + $0x60] sm:$0xff]
        %v220 = vld [vmem:[%s178 + $0x68] sm:$0xff]
        %v221 = vld [vmem:[%s178 + $0x70] sm:$0xff]
        %v222 = vld [vmem:[%s178 + $0x78] sm:$0xff]
        %v223 = vld [vmem:[%s178 + $0x80] sm:$0xff]
        %v224 = vld [vmem:[%s178 + $0x88] sm:$0xff]
        %v225 = vld [vmem:[%s178 + $0x90] sm:$0xff]
        %v226 = vld [vmem:[%s178 + $0x98] sm:$0xff]
        %v227 = vld [vmem:[%s178 + $0xa0] sm:$0xff]
        %v228 = vld [vmem:[%s178 + $0xa8] sm:$0xff]
        %v229 = vld [vmem:[%s178 + $0xb0] sm:$0xff]
        %v230 = vld [vmem:[%s178 + $0xb8] sm:$0xff]
        %v231 = vld [vmem:[%s178 + $0xc0] sm:$0xff]
        %v232 = vld [vmem:[%s178 + $0xc8] sm:$0xff]
        %v233 = vld [vmem:[%s178 + $0xd0] sm:$0xff]
        %v234 = vld [vmem:[%s178 + $0xd8] sm:$0xff]
        %v235 = vld [vmem:[%s178 + $0xe0] sm:$0xff]
        %v236 = vld [vmem:[%s178 + $0xe8] sm:$0xff]
        %v237 = vld [vmem:[%s178 + $0xf0] sm:$0xff]
        %v238 = vld [vmem:[%s178 + $0xf8] sm:$0xff]
        %v239 = vld [vmem:[%s178 + $0x100] sm:$0xff]
        %v240 = vld [vmem:[%s178 + $0x108] sm:$0xff]
        %v241 = vld [vmem:[%s178 + $0x110] sm:$0xff]
        %v242 = vld [vmem:[%s178 + $0x118] sm:$0xff]
        %v243 = vld [vmem:[%s178 + $0x120] sm:$0xff]
        %v244 = vld [vmem:[%s178 + $0x128] sm:$0xff]
        %v245 = vld [vmem:[%s178 + $0x130] sm:$0xff]
        %v246 = vld [vmem:[%s178 + $0x138] sm:$0xff]
        %v247 = vld [vmem:[%s178 + $0x140] sm:$0xff]
        %v248 = vld [vmem:[%s178 + $0x148] sm:$0xff]
        %v249 = vld [vmem:[%s178 + $0x150] sm:$0xff]
        %v250 = vld [vmem:[%s178 + $0x158] sm:$0xff]
        %v251 = vld [vmem:[%s178 + $0x160] sm:$0xff]
        %v252 = vld [vmem:[%s178 + $0x168] sm:$0xff]
        %v253 = vld [vmem:[%s178 + $0x170] sm:$0xff]
        %v254 = vld [vmem:[%s178 + $0x178] sm:$0xff]
        %v255 = vld [vmem:[%s178 + $0x180] sm:$0xff]
        %v256 = vld [vmem:[%s178 + $0x188] sm:$0xff]
        %v257 = vld [vmem:[%s178 + $0x190] sm:$0xff]
        %v258 = vld [vmem:[%s178 + $0x198] sm:$0xff]
        %v259 = vld [vmem:[%s178 + $0x1a0] sm:$0xff]
        %v260 = vld [vmem:[%s178 + $0x1a8] sm:$0xff]
        %v261 = vld [vmem:[%s178 + $0x1b0] sm:$0xff]
        %v262 = vld [vmem:[%s178 + $0x1b8] sm:$0xff]
        %v263 = vld [vmem:[%s178 + $0x1c0] sm:$0xff]
        %v264 = vld [vmem:[%s178 + $0x1c8] sm:$0xff]
        %v265 = vld [vmem:[%s178 + $0x1d0] sm:$0xff]
        %v266 = vld [vmem:[%s178 + $0x1d8] sm:$0xff]
        %v267 = vld [vmem:[%s178 + $0x1e0] sm:$0xff]
        %v268 = vld [vmem:[%s178 + $0x1e8] sm:$0xff]
        %v269 = vld [vmem:[%s178 + $0x1f0] sm:$0xff]
        %v270 = vld [vmem:[%s178 + $0x1f8] sm:$0xff]
        %v271 = vld [vmem:[%s178 + $0x200] sm:$0xff]
        %v272 = vld [vmem:[%s178 + $0x208] sm:$0xff]
        %v273 = vld [vmem:[%s178 + $0x210] sm:$0xff]
        %v274 = vld [vmem:[%s178 + $0x218] sm:$0xff]
        %v275 = vld [vmem:[%s178 + $0x220] sm:$0xff]
        %v276 = vld [vmem:[%s178 + $0x228] sm:$0xff]
        %v277 = vld [vmem:[%s178 + $0x230] sm:$0xff]
        %v278 = vld [vmem:[%s178 + $0x238] sm:$0xff]
        %v279 = vld [vmem:[%s178 + $0x240] sm:$0xff]
        %v280 = vld [vmem:[%s178 + $0x248] sm:$0xff]
        %v281 = vld [vmem:[%s178 + $0x250] sm:$0xff]
        %v282 = vld [vmem:[%s178 + $0x258] sm:$0xff]
        %v283 = vld [vmem:[%s178 + $0x260] sm:$0xff]
        %v284 = vld [vmem:[%s178 + $0x268] sm:$0xff]
        %v285 = vld [vmem:[%s178 + $0x270] sm:$0xff]
        %v286 = vld [vmem:[%s178 + $0x278] sm:$0xff]
        %v287 = vld [vmem:[%s178 + $0x280] sm:$0xff]
        %v288 = vld [vmem:[%s178 + $0x288] sm:$0xff]
        %v289 = vld [vmem:[%s178 + $0x290] sm:$0xff]
        %v290 = vld [vmem:[%s178 + $0x298] sm:$0xff]
        %v291 = vld [vmem:[%s178 + $0x2a0] sm:$0xff]
        %v292 = vld [vmem:[%s178 + $0x2a8] sm:$0xff]
        %v293 = vld [vmem:[%s178 + $0x2b0] sm:$0xff]
        %v294 = vld [vmem:[%s178 + $0x2b8] sm:$0xff]
        %v295 = vld [vmem:[%s178 + $0x2c0] sm:$0xff]
        %v296 = vld [vmem:[%s178 + $0x2c8] sm:$0xff]
        %v297 = vld [vmem:[%s178 + $0x2d0] sm:$0xff]
        %v298 = vld [vmem:[%s178 + $0x2d8] sm:$0xff]
        %v299 = vld [vmem:[%s178 + $0x2e0] sm:$0xff]
        %v300 = vld [vmem:[%s178 + $0x2e8] sm:$0xff]
        %v301 = vld [vmem:[%s178 + $0x2f0] sm:$0xff]
        %v302 = vld [vmem:[%s178 + $0x2f8] sm:$0xff]
        %v303 = vld [vmem:[%s178 + $0x300] sm:$0xff]
        %v304 = vld [vmem:[%s178 + $0x308] sm:$0xff]
        %v305 = vld [vmem:[%s178 + $0x310] sm:$0xff]
        %v306 = vld [vmem:[%s178 + $0x318] sm:$0xff]
        %v307 = vld [vmem:[%s178 + $0x320] sm:$0xff]
        %v308 = vld [vmem:[%s178 + $0x328] sm:$0xff]
        %v309 = vld [vmem:[%s178 + $0x330] sm:$0xff]
        %v310 = vld [vmem:[%s178 + $0x338] sm:$0xff]
        %v311 = vld [vmem:[%s178 + $0x340] sm:$0xff]
        %v312 = vld [vmem:[%s178 + $0x348] sm:$0xff]
        %v313 = vld [vmem:[%s178 + $0x350] sm:$0xff]
        %v314 = vld [vmem:[%s178 + $0x358] sm:$0xff]
        %v315 = vld [vmem:[%s178 + $0x360] sm:$0xff]
        %v316 = vld [vmem:[%s178 + $0x368] sm:$0xff]
        %v317 = vld [vmem:[%s178 + $0x370] sm:$0xff]
        %v318 = vld [vmem:[%s178 + $0x378] sm:$0xff]
        %v319 = vld [vmem:[%s178 + $0x380] sm:$0xff]
        %v320 = vld [vmem:[%s178 + $0x388] sm:$0xff]
        %v321 = vld [vmem:[%s178 + $0x390] sm:$0xff]
        %v322 = vld [vmem:[%s178 + $0x398] sm:$0xff]
        %v323 = vld [vmem:[%s178 + $0x3a0] sm:$0xff]
        %v324 = vld [vmem:[%s178 + $0x3a8] sm:$0xff]
        %v325 = vld [vmem:[%s178 + $0x3b0] sm:$0xff]
        %v326 = vld [vmem:[%s178 + $0x3b8] sm:$0xff]
        %v327 = vld [vmem:[%s178 + $0x3c0] sm:$0xff]
        %v328 = vld [vmem:[%s178 + $0x3c8] sm:$0xff]
        %v329 = vld [vmem:[%s178 + $0x3d0] sm:$0xff]
        %v330 = vld [vmem:[%s178 + $0x3d8] sm:$0xff]
        %v331 = vld [vmem:[%s178 + $0x3e0] sm:$0xff]
        %v332 = vld [vmem:[%s178 + $0x3e8] sm:$0xff]
        %v333 = vld [vmem:[%s178 + $0x3f0] sm:$0xff]
        %v334 = vld [vmem:[%s178 + $0x3f8] sm:$0xff]
        %v335 = vld [vmem:[#allocation5] sm:$0xff]
        %v336 = vld [vmem:[#allocation5 + $0x8] sm:$0xff]
        %v337 = vld [vmem:[#allocation5 + $0x10] sm:$0xff]
        %v338 = vld [vmem:[#allocation5 + $0x18] sm:$0xff]
        %v339 = vld [vmem:[#allocation5 + $0x20] sm:$0xff]
        %v340 = vld [vmem:[#allocation5 + $0x28] sm:$0xff]
        %v341 = vld [vmem:[#allocation5 + $0x30] sm:$0xff]
        %v342 = vld [vmem:[#allocation5 + $0x38] sm:$0xff]
        %v343 = vld [vmem:[#allocation5 + $0x40] sm:$0xff]
        %v344 = vld [vmem:[#allocation5 + $0x48] sm:$0xff]
        %v345 = vld [vmem:[#allocation5 + $0x50] sm:$0xff]
        %v346 = vld [vmem:[#allocation5 + $0x58] sm:$0xff]
        %v347 = vld [vmem:[#allocation5 + $0x60] sm:$0xff]
        %v348 = vld [vmem:[#allocation5 + $0x68] sm:$0xff]
        %v349 = vld [vmem:[#allocation5 + $0x70] sm:$0xff]
        %v350 = vld [vmem:[#allocation5 + $0x78] sm:$0xff]
        %v351 = vld [vmem:[#allocation5 + $0x80] sm:$0xff]
        %v352 = vld [vmem:[#allocation5 + $0x88] sm:$0xff]
        %v353 = vld [vmem:[#allocation5 + $0x90] sm:$0xff]
        %v354 = vld [vmem:[#allocation5 + $0x98] sm:$0xff]
        %v355 = vld [vmem:[#allocation5 + $0xa0] sm:$0xff]
        %v356 = vld [vmem:[#allocation5 + $0xa8] sm:$0xff]
        %v357 = vld [vmem:[#allocation5 + $0xb0] sm:$0xff]
        %v358 = vld [vmem:[#allocation5 + $0xb8] sm:$0xff]
        %v359 = vld [vmem:[#allocation5 + $0xc0] sm:$0xff]
        %v360 = vld [vmem:[#allocation5 + $0xc8] sm:$0xff]
        %v361 = vld [vmem:[#allocation5 + $0xd0] sm:$0xff]
        %v362 = vld [vmem:[#allocation5 + $0xd8] sm:$0xff]
        %v363 = vld [vmem:[#allocation5 + $0xe0] sm:$0xff]
        %v364 = vld [vmem:[#allocation5 + $0xe8] sm:$0xff]
        %v365 = vld [vmem:[#allocation5 + $0xf0] sm:$0xff]
        %v366 = vld [vmem:[#allocation5 + $0xf8] sm:$0xff]
        %v367 = vld [vmem:[%s2] sm:$0x1]
        %v369 = vlaneseq
        %v370 = vshrl.u32 %v369, 7
        %v371 = vsub.s32 0, %v370
        %v372 = vrot.slane %v367, %v371
        %374 = vmatprep.subr.mxu0 0.0
        %375 = vmatpush1.msra.mxu0 %v335
        %376 = vmatprep.subr.mxu0 0.0
        %377 = vmatpush1.msra.mxu0 %v336
        %378 = vmatprep.subr.mxu0 0.0
        %379 = vmatpush1.msra.mxu0 %v337
        %380 = vmatprep.subr.mxu0 0.0
        %381 = vmatpush1.msra.mxu0 %v338
        %382 = vmatprep.subr.mxu0 0.0
        %383 = vmatpush1.msra.mxu0 %v339
        %384 = vmatprep.subr.mxu0 0.0
        %385 = vmatpush1.msra.mxu0 %v340
        %386 = vmatprep.subr.mxu0 0.0
        %387 = vmatpush1.msra.mxu0 %v341
        %388 = vmatprep.subr.mxu0 0.0
        %389 = vmatpush1.msra.mxu0 %v342
        %390 = vmatprep.subr.mxu0 0.0
        %391 = vmatpush1.msra.mxu0 %v343
        %392 = vmatprep.subr.mxu0 0.0
        %393 = vmatpush1.msra.mxu0 %v344
        %394 = vmatprep.subr.mxu0 0.0
        %395 = vmatpush1.msra.mxu0 %v345
        %396 = vmatprep.subr.mxu0 0.0
        %397 = vmatpush1.msra.mxu0 %v346
        %398 = vmatprep.subr.mxu0 0.0
        %399 = vmatpush1.msra.mxu0 %v347
        %400 = vmatprep.subr.mxu0 0.0
        %401 = vmatpush1.msra.mxu0 %v348
        %402 = vmatprep.subr.mxu0 0.0
        %403 = vmatpush1.msra.mxu0 %v349
        %404 = vmatprep.subr.mxu0 0.0
        %405 = vmatpush1.msra.mxu0 %v350
        %406 = vmatprep.subr.mxu0 0.0
        %407 = vmatpush1.msra.mxu0 %v351
        %408 = vmatprep.subr.mxu0 0.0
        %409 = vmatpush1.msra.mxu0 %v352
        %410 = vmatprep.subr.mxu0 0.0
        %411 = vmatpush1.msra.mxu0 %v353
        %412 = vmatprep.subr.mxu0 0.0
        %413 = vmatpush1.msra.mxu0 %v354
        %414 = vmatprep.subr.mxu0 0.0
        %415 = vmatpush1.msra.mxu0 %v355
        %416 = vmatprep.subr.mxu0 0.0
        %417 = vmatpush1.msra.mxu0 %v356
        %418 = vmatprep.subr.mxu0 0.0
        %419 = vmatpush1.msra.mxu0 %v357
        %420 = vmatprep.subr.mxu0 0.0
        %421 = vmatpush1.msra.mxu0 %v358
        %422 = vmatprep.subr.mxu0 0.0
        %423 = vmatpush1.msra.mxu0 %v359
        %424 = vmatprep.subr.mxu0 0.0
        %425 = vmatpush1.msra.mxu0 %v360
        %426 = vmatprep.subr.mxu0 0.0
        %427 = vmatpush1.msra.mxu0 %v361
        %428 = vmatprep.subr.mxu0 0.0
        %429 = vmatpush1.msra.mxu0 %v362
        %430 = vmatprep.subr.mxu0 0.0
        %431 = vmatpush1.msra.mxu0 %v363
        %432 = vmatprep.subr.mxu0 0.0
        %433 = vmatpush1.msra.mxu0 %v364
        %434 = vmatprep.subr.mxu0 0.0
        %435 = vmatpush1.msra.mxu0 %v365
        %436 = vmatprep.subr.mxu0 0.0
        %437 = vmatpush1.msra.mxu0 %v366
        %438 = vmatprep.mubr.f32.mxu0 %v208
        %439 = vmatmul.mubr.f32.gmra.mrb[0].mxu0 %v207
        %v440 = vpop.f32.mrb[0].mxu0
        %v441 = vadd.f32 %v372, %v440
        %v442 = vpop.f32.mrb[0].mxu0
        %443 = vmatprep.mubr.f32.mxu0 %v210
        %444 = vmatmul.mubr.f32.gmra.mrb[0].mxu0 %v209
        %v445 = vpop.f32.mrb[0].mxu0
        %v446 = vadd.f32 %v372, %v445
        %v447 = vpop.f32.mrb[0].mxu0
        %448 = vmatprep.mubr.f32.mxu0 %v212
        %449 = vmatmul.mubr.f32.gmra.mrb[0].mxu0 %v211
        %v450 = vpop.f32.mrb[0].mxu0
        %v451 = vadd.f32 %v372, %v450
        %v452 = vpop.f32.mrb[0].mxu0
        %453 = vmatprep.mubr.f32.mxu0 %v214
        %454 = vmatmul.mubr.f32.gmra.mrb[0].mxu0 %v213
        %v455 = vpop.f32.mrb[0].mxu0
        %v456 = vadd.f32 %v372, %v455
        %v457 = vpop.f32.mrb[0].mxu0
        %458 = vmatprep.mubr.f32.mxu0 %v216
        %459 = vmatmul.mubr.f32.gmra.mrb[0].mxu0 %v215
        %v460 = vpop.f32.mrb[0].mxu0
        %v461 = vadd.f32 %v372, %v460
        %v462 = vpop.f32.mrb[0].mxu0
        %463 = vmatprep.mubr.f32.mxu0 %v218
        %464 = vmatmul.mubr.f32.gmra.mrb[0].mxu0 %v217
        %v465 = vpop.f32.mrb[0].mxu0
        %v466 = vadd.f32 %v372, %v465
        %v467 = vpop.f32.mrb[0].mxu0
        %468 = vmatprep.mubr.f32.mxu0 %v220
        %469 = vmatmul.mubr.f32.gmra.mrb[0].mxu0 %v219
        %v470 = vpop.f32.mrb[0].mxu0
        %v471 = vadd.f32 %v372, %v470
        %v472 = vpop.f32.mrb[0].mxu0
        %473 = vmatprep.mubr.f32.mxu0 %v222
        %474 = vmatmul.mubr.f32.gmra.mrb[0].mxu0 %v221
        %v475 = vpop.f32.mrb[0].mxu0
        %v476 = vadd.f32 %v372, %v475
        %v477 = vpop.f32.mrb[0].mxu0
        %478 = vmatprep.mubr.f32.mxu0 %v224
        %479 = vmatmul.mubr.f32.gmra.mrb[0].mxu0 %v223
        %v480 = vpop.f32.mrb[0].mxu0
        %v481 = vadd.f32 %v372, %v480
        %v482 = vpop.f32.mrb[0].mxu0
        %483 = vmatprep.mubr.f32.mxu0 %v226
        %484 = vmatmul.mubr.f32.gmra.mrb[0].mxu0 %v225
        %v485 = vpop.f32.mrb[0].mxu0
        %v486 = vadd.f32 %v372, %v485
        %v487 = vpop.f32.mrb[0].mxu0
        %488 = vmatprep.mubr.f32.mxu0 %v228
        %489 = vmatmul.mubr.f32.gmra.mrb[0].mxu0 %v227
        %v490 = vpop.f32.mrb[0].mxu0
        %v491 = vadd.f32 %v372, %v490
        %v492 = vpop.f32.mrb[0].mxu0
        %493 = vmatprep.mubr.f32.mxu0 %v230
        %494 = vmatmul.mubr.f32.gmra.mrb[0].mxu0 %v229
        %v495 = vpop.f32.mrb[0].mxu0
        %v496 = vadd.f32 %v372, %v495
        %v497 = vpop.f32.mrb[0].mxu0
        %498 = vmatprep.mubr.f32.mxu0 %v232
        %499 = vmatmul.mubr.f32.gmra.mrb[0].mxu0 %v231
        %v500 = vpop.f32.mrb[0].mxu0
        %v501 = vadd.f32 %v372, %v500
        %v502 = vpop.f32.mrb[0].mxu0
        %503 = vmatprep.mubr.f32.mxu0 %v234
        %504 = vmatmul.mubr.f32.gmra.mrb[0].mxu0 %v233
        %v505 = vpop.f32.mrb[0].mxu0
        %v506 = vadd.f32 %v372, %v505
        %v507 = vpop.f32.mrb[0].mxu0
        %508 = vmatprep.mubr.f32.mxu0 %v236
        %509 = vmatmul.mubr.f32.gmra.mrb[0].mxu0 %v235
        %v510 = vpop.f32.mrb[0].mxu0
        %v511 = vadd.f32 %v372, %v510
        %v512 = vpop.f32.mrb[0].mxu0
        %513 = vmatprep.mubr.f32.mxu0 %v238
        %514 = vmatmul.mubr.f32.gmra.mrb[0].mxu0 %v237
        %v515 = vpop.f32.mrb[0].mxu0
        %v516 = vadd.f32 %v372, %v515
        %v517 = vpop.f32.mrb[0].mxu0
        %518 = vmatprep.mubr.f32.mxu0 %v240
        %519 = vmatmul.mubr.f32.gmra.mrb[0].mxu0 %v239
        %v520 = vpop.f32.mrb[0].mxu0
        %v521 = vadd.f32 %v372, %v520
        %v522 = vpop.f32.mrb[0].mxu0
        %523 = vmatprep.mubr.f32.mxu0 %v242
        %524 = vmatmul.mubr.f32.gmra.mrb[0].mxu0 %v241
        %v525 = vpop.f32.mrb[0].mxu0
        %v526 = vadd.f32 %v372, %v525
        %v527 = vpop.f32.mrb[0].mxu0
        %528 = vmatprep.mubr.f32.mxu0 %v244
        %529 = vmatmul.mubr.f32.gmra.mrb[0].mxu0 %v243
        %v530 = vpop.f32.mrb[0].mxu0
        %v531 = vadd.f32 %v372, %v530
        %v532 = vpop.f32.mrb[0].mxu0
        %533 = vmatprep.mubr.f32.mxu0 %v246
        %534 = vmatmul.mubr.f32.gmra.mrb[0].mxu0 %v245
        %v535 = vpop.f32.mrb[0].mxu0
        %v536 = vadd.f32 %v372, %v535
        %v537 = vpop.f32.mrb[0].mxu0
        %538 = vmatprep.mubr.f32.mxu0 %v248
        %539 = vmatmul.mubr.f32.gmra.mrb[0].mxu0 %v247
        %v540 = vpop.f32.mrb[0].mxu0
        %v541 = vadd.f32 %v372, %v540
        %v542 = vpop.f32.mrb[0].mxu0
        %543 = vmatprep.mubr.f32.mxu0 %v250
        %544 = vmatmul.mubr.f32.gmra.mrb[0].mxu0 %v249
        %v545 = vpop.f32.mrb[0].mxu0
        %v546 = vadd.f32 %v372, %v545
        %v547 = vpop.f32.mrb[0].mxu0
        %548 = vmatprep.mubr.f32.mxu0 %v252
        %549 = vmatmul.mubr.f32.gmra.mrb[0].mxu0 %v251
        %v550 = vpop.f32.mrb[0].mxu0
        %v551 = vadd.f32 %v372, %v550
        %v552 = vpop.f32.mrb[0].mxu0
        %553 = vmatprep.mubr.f32.mxu0 %v254
        %554 = vmatmul.mubr.f32.gmra.mrb[0].mxu0 %v253
        %v555 = vpop.f32.mrb[0].mxu0
        %v556 = vadd.f32 %v372, %v555
        %v557 = vpop.f32.mrb[0].mxu0
        %558 = vmatprep.mubr.f32.mxu0 %v256
        %559 = vmatmul.mubr.f32.gmra.mrb[0].mxu0 %v255
        %v560 = vpop.f32.mrb[0].mxu0
        %v561 = vadd.f32 %v372, %v560
        %v562 = vpop.f32.mrb[0].mxu0
        %563 = vmatprep.mubr.f32.mxu0 %v258
        %564 = vmatmul.mubr.f32.gmra.mrb[0].mxu0 %v257
        %v565 = vpop.f32.mrb[0].mxu0
        %v566 = vadd.f32 %v372, %v565
        %v567 = vpop.f32.mrb[0].mxu0
        %568 = vmatprep.mubr.f32.mxu0 %v260
        %569 = vmatmul.mubr.f32.gmra.mrb[0].mxu0 %v259
        %v570 = vpop.f32.mrb[0].mxu0
        %v571 = vadd.f32 %v372, %v570
        %v572 = vpop.f32.mrb[0].mxu0
        %573 = vmatprep.mubr.f32.mxu0 %v262
        %574 = vmatmul.mubr.f32.gmra.mrb[0].mxu0 %v261
        %v575 = vpop.f32.mrb[0].mxu0
        %v576 = vadd.f32 %v372, %v575
        %v577 = vpop.f32.mrb[0].mxu0
        %578 = vmatprep.mubr.f32.mxu0 %v264
        %579 = vmatmul.mubr.f32.gmra.mrb[0].mxu0 %v263
        %v580 = vpop.f32.mrb[0].mxu0
        %v581 = vadd.f32 %v372, %v580
        %v582 = vpop.f32.mrb[0].mxu0
        %583 = vmatprep.mubr.f32.mxu0 %v266
        %584 = vmatmul.mubr.f32.gmra.mrb[0].mxu0 %v265
        %v585 = vpop.f32.mrb[0].mxu0
        %v586 = vadd.f32 %v372, %v585
        %v587 = vpop.f32.mrb[0].mxu0
        %588 = vmatprep.mubr.f32.mxu0 %v268
        %589 = vmatmul.mubr.f32.gmra.mrb[0].mxu0 %v267
        %v590 = vpop.f32.mrb[0].mxu0
        %v591 = vadd.f32 %v372, %v590
        %v592 = vpop.f32.mrb[0].mxu0
        %593 = vmatprep.mubr.f32.mxu0 %v270
        %594 = vmatmul.mubr.f32.gmra.mrb[0].mxu0 %v269
        %v595 = vpop.f32.mrb[0].mxu0
        %v596 = vadd.f32 %v372, %v595
        %v597 = vpop.f32.mrb[0].mxu0
        %598 = vmatprep.mubr.f32.mxu0 %v272
        %599 = vmatmul.mubr.f32.gmra.mrb[0].mxu0 %v271
        %v600 = vpop.f32.mrb[0].mxu0
        %v601 = vadd.f32 %v372, %v600
        %v602 = vpop.f32.mrb[0].mxu0
        %603 = vmatprep.mubr.f32.mxu0 %v274
        %604 = vmatmul.mubr.f32.gmra.mrb[0].mxu0 %v273
        %v605 = vpop.f32.mrb[0].mxu0
        %v606 = vadd.f32 %v372, %v605
        %v607 = vpop.f32.mrb[0].mxu0
        %608 = vmatprep.mubr.f32.mxu0 %v276
        %609 = vmatmul.mubr.f32.gmra.mrb[0].mxu0 %v275
        %v610 = vpop.f32.mrb[0].mxu0
        %v611 = vadd.f32 %v372, %v610
        %v612 = vpop.f32.mrb[0].mxu0
        %613 = vmatprep.mubr.f32.mxu0 %v278
        %614 = vmatmul.mubr.f32.gmra.mrb[0].mxu0 %v277
        %v615 = vpop.f32.mrb[0].mxu0
        %v616 = vadd.f32 %v372, %v615
        %v617 = vpop.f32.mrb[0].mxu0
        %618 = vmatprep.mubr.f32.mxu0 %v280
        %619 = vmatmul.mubr.f32.gmra.mrb[0].mxu0 %v279
        %v620 = vpop.f32.mrb[0].mxu0
        %v621 = vadd.f32 %v372, %v620
        %v622 = vpop.f32.mrb[0].mxu0
        %623 = vmatprep.mubr.f32.mxu0 %v282
        %624 = vmatmul.mubr.f32.gmra.mrb[0].mxu0 %v281
        %v625 = vpop.f32.mrb[0].mxu0
        %v626 = vadd.f32 %v372, %v625
        %v627 = vpop.f32.mrb[0].mxu0
        %628 = vmatprep.mubr.f32.mxu0 %v284
        %629 = vmatmul.mubr.f32.gmra.mrb[0].mxu0 %v283
        %v630 = vpop.f32.mrb[0].mxu0
        %v631 = vadd.f32 %v372, %v630
        %v632 = vpop.f32.mrb[0].mxu0
        %633 = vmatprep.mubr.f32.mxu0 %v286
        %634 = vmatmul.mubr.f32.gmra.mrb[0].mxu0 %v285
        %v635 = vpop.f32.mrb[0].mxu0
        %v636 = vadd.f32 %v372, %v635
        %v637 = vpop.f32.mrb[0].mxu0
        %638 = vmatprep.mubr.f32.mxu0 %v288
        %639 = vmatmul.mubr.f32.gmra.mrb[0].mxu0 %v287
        %v640 = vpop.f32.mrb[0].mxu0
        %v641 = vadd.f32 %v372, %v640
        %v642 = vpop.f32.mrb[0].mxu0
        %643 = vmatprep.mubr.f32.mxu0 %v290
        %644 = vmatmul.mubr.f32.gmra.mrb[0].mxu0 %v289
        %v645 = vpop.f32.mrb[0].mxu0
        %v646 = vadd.f32 %v372, %v645
        %v647 = vpop.f32.mrb[0].mxu0
        %648 = vmatprep.mubr.f32.mxu0 %v292
        %649 = vmatmul.mubr.f32.gmra.mrb[0].mxu0 %v291
        %v650 = vpop.f32.mrb[0].mxu0
        %v651 = vadd.f32 %v372, %v650
        %v652 = vpop.f32.mrb[0].mxu0
        %653 = vmatprep.mubr.f32.mxu0 %v294
        %654 = vmatmul.mubr.f32.gmra.mrb[0].mxu0 %v293
        %v655 = vpop.f32.mrb[0].mxu0
        %v656 = vadd.f32 %v372, %v655
        %v657 = vpop.f32.mrb[0].mxu0
        %658 = vmatprep.mubr.f32.mxu0 %v296
        %659 = vmatmul.mubr.f32.gmra.mrb[0].mxu0 %v295
        %v660 = vpop.f32.mrb[0].mxu0
        %v661 = vadd.f32 %v372, %v660
        %v662 = vpop.f32.mrb[0].mxu0
        %663 = vmatprep.mubr.f32.mxu0 %v298
        %664 = vmatmul.mubr.f32.gmra.mrb[0].mxu0 %v297
        %v665 = vpop.f32.mrb[0].mxu0
        %v666 = vadd.f32 %v372, %v665
        %v667 = vpop.f32.mrb[0].mxu0
        %668 = vmatprep.mubr.f32.mxu0 %v300
        %669 = vmatmul.mubr.f32.gmra.mrb[0].mxu0 %v299
        %v670 = vpop.f32.mrb[0].mxu0
        %v671 = vadd.f32 %v372, %v670
        %v672 = vpop.f32.mrb[0].mxu0
        %673 = vmatprep.mubr.f32.mxu0 %v302
        %674 = vmatmul.mubr.f32.gmra.mrb[0].mxu0 %v301
        %v675 = vpop.f32.mrb[0].mxu0
        %v676 = vadd.f32 %v372, %v675
        %v677 = vpop.f32.mrb[0].mxu0
        %678 = vmatprep.mubr.f32.mxu0 %v304
        %679 = vmatmul.mubr.f32.gmra.mrb[0].mxu0 %v303
        %v680 = vpop.f32.mrb[0].mxu0
        %v681 = vadd.f32 %v372, %v680
        %v682 = vpop.f32.mrb[0].mxu0
        %683 = vmatprep.mubr.f32.mxu0 %v306
        %684 = vmatmul.mubr.f32.gmra.mrb[0].mxu0 %v305
        %v685 = vpop.f32.mrb[0].mxu0
        %v686 = vadd.f32 %v372, %v685
        %v687 = vpop.f32.mrb[0].mxu0
        %688 = vmatprep.mubr.f32.mxu0 %v308
        %689 = vmatmul.mubr.f32.gmra.mrb[0].mxu0 %v307
        %v690 = vpop.f32.mrb[0].mxu0
        %v691 = vadd.f32 %v372, %v690
        %v692 = vpop.f32.mrb[0].mxu0
        %693 = vmatprep.mubr.f32.mxu0 %v310
        %694 = vmatmul.mubr.f32.gmra.mrb[0].mxu0 %v309
        %v695 = vpop.f32.mrb[0].mxu0
        %v696 = vadd.f32 %v372, %v695
        %v697 = vpop.f32.mrb[0].mxu0
        %698 = vmatprep.mubr.f32.mxu0 %v312
        %699 = vmatmul.mubr.f32.gmra.mrb[0].mxu0 %v311
        %v700 = vpop.f32.mrb[0].mxu0
        %v701 = vadd.f32 %v372, %v700
        %v702 = vpop.f32.mrb[0].mxu0
        %703 = vmatprep.mubr.f32.mxu0 %v314
        %704 = vmatmul.mubr.f32.gmra.mrb[0].mxu0 %v313
        %v705 = vpop.f32.mrb[0].mxu0
        %v706 = vadd.f32 %v372, %v705
        %v707 = vpop.f32.mrb[0].mxu0
        %708 = vmatprep.mubr.f32.mxu0 %v316
        %709 = vmatmul.mubr.f32.gmra.mrb[0].mxu0 %v315
        %v710 = vpop.f32.mrb[0].mxu0
        %v711 = vadd.f32 %v372, %v710
        %v712 = vpop.f32.mrb[0].mxu0
        %713 = vmatprep.mubr.f32.mxu0 %v318
        %714 = vmatmul.mubr.f32.gmra.mrb[0].mxu0 %v317
        %v715 = vpop.f32.mrb[0].mxu0
        %v716 = vadd.f32 %v372, %v715
        %v717 = vpop.f32.mrb[0].mxu0
        %718 = vmatprep.mubr.f32.mxu0 %v320
        %719 = vmatmul.mubr.f32.gmra.mrb[0].mxu0 %v319
        %v720 = vpop.f32.mrb[0].mxu0
        %v721 = vadd.f32 %v372, %v720
        %v722 = vpop.f32.mrb[0].mxu0
        %723 = vmatprep.mubr.f32.mxu0 %v322
        %724 = vmatmul.mubr.f32.gmra.mrb[0].mxu0 %v321
        %v725 = vpop.f32.mrb[0].mxu0
        %v726 = vadd.f32 %v372, %v725
        %v727 = vpop.f32.mrb[0].mxu0
        %728 = vmatprep.mubr.f32.mxu0 %v324
        %729 = vmatmul.mubr.f32.gmra.mrb[0].mxu0 %v323
        %v730 = vpop.f32.mrb[0].mxu0
        %v731 = vadd.f32 %v372, %v730
        %v732 = vpop.f32.mrb[0].mxu0
        %733 = vmatprep.mubr.f32.mxu0 %v326
        %734 = vmatmul.mubr.f32.gmra.mrb[0].mxu0 %v325
        %v735 = vpop.f32.mrb[0].mxu0
        %v736 = vadd.f32 %v372, %v735
        %v737 = vpop.f32.mrb[0].mxu0
        %738 = vmatprep.mubr.f32.mxu0 %v328
        %739 = vmatmul.mubr.f32.gmra.mrb[0].mxu0 %v327
        %v740 = vpop.f32.mrb[0].mxu0
        %v741 = vadd.f32 %v372, %v740
        %v742 = vpop.f32.mrb[0].mxu0
        %743 = vmatprep.mubr.f32.mxu0 %v330
        %744 = vmatmul.mubr.f32.gmra.mrb[0].mxu0 %v329
        %v745 = vpop.f32.mrb[0].mxu0
        %v746 = vadd.f32 %v372, %v745
        %v747 = vpop.f32.mrb[0].mxu0
        %748 = vmatprep.mubr.f32.mxu0 %v332
        %749 = vmatmul.mubr.f32.gmra.mrb[0].mxu0 %v331
        %v750 = vpop.f32.mrb[0].mxu0
        %v751 = vadd.f32 %v372, %v750
        %v752 = vpop.f32.mrb[0].mxu0
        %753 = vmatprep.mubr.f32.mxu0 %v334
        %754 = vmatmul.mubr.f32.gmra.mrb[0].mxu0 %v333
        %v755 = vpop.f32.mrb[0].mxu0
        %v756 = vadd.f32 %v372, %v755
        %v757 = vpop.f32.mrb[0].mxu0
        %758 = vdwg.mxu0
        %v759 = vtanh.pop %v441
        %v760 = vtanh.pop %v446
        %v761 = vtanh.pop %v451
        %v762 = vtanh.pop %v456
        %v763 = vtanh.pop %v461
        %v764 = vtanh.pop %v466
        %v765 = vtanh.pop %v471
        %v766 = vtanh.pop %v476
        %v767 = vtanh.pop %v481
        %v768 = vtanh.pop %v486
        %v769 = vtanh.pop %v491
        %v770 = vtanh.pop %v496
        %v771 = vtanh.pop %v501
        %v772 = vtanh.pop %v506
        %v773 = vtanh.pop %v511
        %v774 = vtanh.pop %v516
        %v775 = vtanh.pop %v521
        %v776 = vtanh.pop %v526
        %v777 = vtanh.pop %v531
        %v778 = vtanh.pop %v536
        %v779 = vtanh.pop %v541
        %v780 = vtanh.pop %v546
        %v781 = vtanh.pop %v551
        %v782 = vtanh.pop %v556
        %v783 = vtanh.pop %v561
        %v784 = vtanh.pop %v566
        %v785 = vtanh.pop %v571
        %v786 = vtanh.pop %v576
        %v787 = vtanh.pop %v581
        %v788 = vtanh.pop %v586
        %v789 = vtanh.pop %v591
        %v790 = vtanh.pop %v596
        %v791 = vtanh.pop %v601
        %v792 = vtanh.pop %v606
        %v793 = vtanh.pop %v611
        %v794 = vtanh.pop %v616
        %v795 = vtanh.pop %v621
        %v796 = vtanh.pop %v626
        %v797 = vtanh.pop %v631
        %v798 = vtanh.pop %v636
        %v799 = vtanh.pop %v641
        %v800 = vtanh.pop %v646
        %v801 = vtanh.pop %v651
        %v802 = vtanh.pop %v656
        %v803 = vtanh.pop %v661
        %v804 = vtanh.pop %v666
        %v805 = vtanh.pop %v671
        %v806 = vtanh.pop %v676
        %v807 = vtanh.pop %v681
        %v808 = vtanh.pop %v686
        %v809 = vtanh.pop %v691
        %v810 = vtanh.pop %v696
        %v811 = vtanh.pop %v701
        %v812 = vtanh.pop %v706
        %v813 = vtanh.pop %v711
        %v814 = vtanh.pop %v716
        %v815 = vtanh.pop %v721
        %v816 = vtanh.pop %v726
        %v817 = vtanh.pop %v731
        %v818 = vtanh.pop %v736
        %v819 = vtanh.pop %v741
        %v820 = vtanh.pop %v746
        %v821 = vtanh.pop %v751
        %v822 = vtanh.pop %v756
        %823 = vst [vmem:[%s204] sm:$0xff] %v759
        %824 = vst [vmem:[%s204 + $0x8] sm:$0xff] %v760
        %825 = vst [vmem:[%s204 + $0x10] sm:$0xff] %v761
        %826 = vst [vmem:[%s204 + $0x18] sm:$0xff] %v762
        %827 = vst [vmem:[%s204 + $0x20] sm:$0xff] %v763
        %828 = vst [vmem:[%s204 + $0x28] sm:$0xff] %v764
        %829 = vst [vmem:[%s204 + $0x30] sm:$0xff] %v765
        %830 = vst [vmem:[%s204 + $0x38] sm:$0xff] %v766
        %831 = vst [vmem:[%s204 + $0x40] sm:$0xff] %v767
        %832 = vst [vmem:[%s204 + $0x48] sm:$0xff] %v768
        %833 = vst [vmem:[%s204 + $0x50] sm:$0xff] %v769
        %834 = vst [vmem:[%s204 + $0x58] sm:$0xff] %v770
        %835 = vst [vmem:[%s204 + $0x60] sm:$0xff] %v771
        %836 = vst [vmem:[%s204 + $0x68] sm:$0xff] %v772
        %837 = vst [vmem:[%s204 + $0x70] sm:$0xff] %v773
        %838 = vst [vmem:[%s204 + $0x78] sm:$0xff] %v774
        %839 = vst [vmem:[%s204 + $0x80] sm:$0xff] %v775
        %840 = vst [vmem:[%s204 + $0x88] sm:$0xff] %v776
        %841 = vst [vmem:[%s204 + $0x90] sm:$0xff] %v777
        %842 = vst [vmem:[%s204 + $0x98] sm:$0xff] %v778
        %843 = vst [vmem:[%s204 + $0xa0] sm:$0xff] %v779
        %844 = vst [vmem:[%s204 + $0xa8] sm:$0xff] %v780
        %845 = vst [vmem:[%s204 + $0xb0] sm:$0xff] %v781
        %846 = vst [vmem:[%s204 + $0xb8] sm:$0xff] %v782
        %847 = vst [vmem:[%s204 + $0xc0] sm:$0xff] %v783
        %848 = vst [vmem:[%s204 + $0xc8] sm:$0xff] %v784
        %849 = vst [vmem:[%s204 + $0xd0] sm:$0xff] %v785
        %850 = vst [vmem:[%s204 + $0xd8] sm:$0xff] %v786
        %851 = vst [vmem:[%s204 + $0xe0] sm:$0xff] %v787
        %852 = vst [vmem:[%s204 + $0xe8] sm:$0xff] %v788
        %853 = vst [vmem:[%s204 + $0xf0] sm:$0xff] %v789
        %854 = vst [vmem:[%s204 + $0xf8] sm:$0xff] %v790
        %855 = vst [vmem:[%s204 + $0x100] sm:$0xff] %v791
        %856 = vst [vmem:[%s204 + $0x108] sm:$0xff] %v792
        %857 = vst [vmem:[%s204 + $0x110] sm:$0xff] %v793
        %858 = vst [vmem:[%s204 + $0x118] sm:$0xff] %v794
        %859 = vst [vmem:[%s204 + $0x120] sm:$0xff] %v795
        %860 = vst [vmem:[%s204 + $0x128] sm:$0xff] %v796
        %861 = vst [vmem:[%s204 + $0x130] sm:$0xff] %v797
        %862 = vst [vmem:[%s204 + $0x138] sm:$0xff] %v798
        %863 = vst [vmem:[%s204 + $0x140] sm:$0xff] %v799
        %864 = vst [vmem:[%s204 + $0x148] sm:$0xff] %v800
        %865 = vst [vmem:[%s204 + $0x150] sm:$0xff] %v801
        %866 = vst [vmem:[%s204 + $0x158] sm:$0xff] %v802
        %867 = vst [vmem:[%s204 + $0x160] sm:$0xff] %v803
        %868 = vst [vmem:[%s204 + $0x168] sm:$0xff] %v804
        %869 = vst [vmem:[%s204 + $0x170] sm:$0xff] %v805
        %870 = vst [vmem:[%s204 + $0x178] sm:$0xff] %v806
        %871 = vst [vmem:[%s204 + $0x180] sm:$0xff] %v807
        %872 = vst [vmem:[%s204 + $0x188] sm:$0xff] %v808
        %873 = vst [vmem:[%s204 + $0x190] sm:$0xff] %v809
        %874 = vst [vmem:[%s204 + $0x198] sm:$0xff] %v810
        %875 = vst [vmem:[%s204 + $0x1a0] sm:$0xff] %v811
        %876 = vst [vmem:[%s204 + $0x1a8] sm:$0xff] %v812
        %877 = vst [vmem:[%s204 + $0x1b0] sm:$0xff] %v813
        %878 = vst [vmem:[%s204 + $0x1b8] sm:$0xff] %v814
        %879 = vst [vmem:[%s204 + $0x1c0] sm:$0xff] %v815
        %880 = vst [vmem:[%s204 + $0x1c8] sm:$0xff] %v816
        %881 = vst [vmem:[%s204 + $0x1d0] sm:$0xff] %v817
        %882 = vst [vmem:[%s204 + $0x1d8] sm:$0xff] %v818
        %883 = vst [vmem:[%s204 + $0x1e0] sm:$0xff] %v819
        %884 = vst [vmem:[%s204 + $0x1e8] sm:$0xff] %v820
        %885 = vst [vmem:[%s204 + $0x1f0] sm:$0xff] %v821
        %886 = vst [vmem:[%s204 + $0x1f8] sm:$0xff] %v822
        %s887 = sand.u32 %s97, 1
        %s888 = scalar_lea.sflag [#allocation4], %s887
        %s889 = sand.u32 %s97, 1
        %s890 = smul.addr %s889, 512
        %s891 = scalar_lea.vmem [#allocation7], %s890
        // Predicated region
        $region41: #{tpu_custom_call.1} parent=31 // pred_check
          %p892 = pneg %p107
        $region42: #{tpu_custom_call.1} parent=31 // pred_check_branch
          %894 = sbr.rel (%p892) target = $region44
        $region43: #{tpu_custom_call.1} parent=31 // pred_region
          %s895 = smul.u32 64, %s21
          %s897 = ssub.s32 8192, 8192
          %898 = vsyncadd %s888, %s897
          %s899 = smul.addr %s895, 128
          %s900 = scalar_lea.hbm %s3, %s899
          %s901 = sshll.u32 %s891, 4
          %s902 = int_to_ptr.vmem [resolvable:$true] %s901
          %907 = dma.vmem_to_hbm [thread:$0]  %s902, 8192, %s900, %s888, 128, 128, 8
        $region44: #{tpu_custom_call.1} parent=31 // pred_fallthru
          _
      $region32: #{tpu_custom_call.1} parent=5 // pred_fallthru
        _
      %p908 = scmp.le.s32.totalorder 2, %s16
      // Predicated region
      $region45: #{tpu_custom_call.1} parent=5 // pred_check
        %p909 = pneg %p908
      $region46: #{tpu_custom_call.1} parent=5 // pred_check_branch
        %911 = sbr.rel (%p909) target = $region48
      $region47: #{tpu_custom_call.1} parent=5 // pred_region
        %s912 = ssub.s32 %s16, 2
        // Predicated region
        $region49: #{tpu_custom_call.1} parent=47 // pred_check
          %p913 = pneg %p113
        $region50: #{tpu_custom_call.1} parent=47 // pred_check_branch
          %915 = sbr.rel (%p913) target = $region52
        $region51: #{tpu_custom_call.1} parent=47 // pred_region
          %s916 = sand.u32 %s98, 1
          %s917 = scalar_lea.sflag [#allocation4], %s916
          %s918 = sand.u32 %s98, 1
          %s919 = smul.addr %s918, 512
          %s920 = scalar_lea.vmem [#allocation7], %s919
          %921 = dma.done %s917, 8192
        $region52: #{tpu_custom_call.1} parent=47 // pred_fallthru
          _
      $region48: #{tpu_custom_call.1} parent=5 // pred_fallthru
        _
    $region6: #{tpu_custom_call.1} parent=1 // loop_footer
      %s20 = sadd.s32 1, %s16
    $region7: #{tpu_custom_call.1} parent=1 // loop_footer_branch
      %15 = sbr.rel target = $region3
    $region8: #{tpu_custom_call.1} parent=1 // loop_exit
      _
    %922 = vsyncpa [#allocation3], 1
    %s923 = scalar_lea.sflag [#allocation3], 1
    %924 = vsyncpa %s923, 1
    %925 = vsyncpa [#allocation6], 1
    %926 = vsyncpa [#allocation4], 1
    %s927 = scalar_lea.sflag [#allocation4], 1
    %928 = vsyncpa %s927, 1

</llo_original>
